<compile_context>
chip_gen: v6e
topology: v6e:2x2x1
jax: 0.10.0
libtpu: 0.0.40
codegen_flags: <defaults>
</compile_context>

<pallas_src>
import functools

import jax
import jax.numpy as jnp
from jax.experimental import pallas as pl
from jax.experimental.pallas import tpu as pltpu


# ------------------------- config (synthetic, small) -------------------------
class Config:
    vocab_size = 100
    embedding_size = 32
    num_filters = 64
    kernel_size = 3
    fc_hidden_node = 32
    num_classes = 8
    dropout_zero_prob = 0.5
    seq_len = 16
    batch = 8


config = Config

_LANE = 128     # lane width: vocab / F / H / C all padded to this


def _round_up(x, m):
    return (x + m - 1) // m * m


# ------------------------------- Pallas kernel -------------------------------
def textcnn_kernel(ids_ref, wconv_ref, wfc_ref, bfc_ref, wlog_ref, blog_ref,
                   out_ref, *, batch, lout):
    rows, K = ids_ref.shape            # rows = B * L  (128 here), K taps
    KVp, Fp = wconv_ref.shape          # (K*Vp, Fp) folded emb@conv weights
    Vp = KVp // K
    L = rows // batch

    ids = ids_ref[...]                                            # (rows, K) i32

    # ---- per-tap one-hots, bf16, lane width exactly Vp = 128 ----
    vocab_iota = jax.lax.broadcasted_iota(jnp.int32, (rows, Vp), 1)
    pieces = [(ids[:, k:k + 1] == vocab_iota).astype(jnp.bfloat16)
              for k in range(K)]
    onehot = jnp.concatenate(pieces, axis=-1)                     # (rows, K*Vp)

    # ---- gather + Conv1d fused: ONE MXU matmul (rows, K*Vp) @ (K*Vp, Fp) ----
    conv = jnp.dot(onehot, wconv_ref[...],
                   preferred_element_type=jnp.float32)            # (rows, Fp)
    conv3 = conv.reshape(batch, L, Fp)                            # (B, L, Fp)

    # ---- global max-pool: mask invalid time steps to -inf, full-extent max ----
    t_iota = jax.lax.broadcasted_iota(jnp.int32, (batch, L, Fp), 1)
    masked = jnp.where(t_iota < lout, conv3, -jnp.inf)
    pool = jnp.max(masked, axis=1)                                # (B, Fp) f32

    # ---- fc (conv bias + eval BatchNorm folded in) -> ReLU -> dropout(id) ----
    hidden = jnp.dot(pool.astype(jnp.bfloat16), wfc_ref[...],
                     preferred_element_type=jnp.float32) + bfc_ref[...]
    relu = jnp.maximum(hidden, 0.0)                               # (B, Hp) f32

    # ---- logits (lane-dense Cp output; sliced back in the wrapper) ----
    out_ref[...] = jnp.dot(relu.astype(jnp.bfloat16), wlog_ref[...],
                           preferred_element_type=jnp.float32) + blog_ref[...]


# ------------------------- one-time parameter prep ---------------------------
def prepare_params(params):
    """Hoisted out of the forward: embedding->conv fold, BN/bias folds, padding,
    bf16 casts."""
    E = config.embedding_size
    F = config.num_filters
    H = config.fc_hidden_node
    C = config.num_classes
    K = config.kernel_size
    V = config.vocab_size
    Vp = _round_up(V, _LANE)       # 128: exact MXU depth on v5e
    Fp = _round_up(F, _LANE)       # 128
    Hp = _round_up(H, _LANE)       # 128
    Cp = _round_up(C, _LANE)       # 128

    # Embedding table padded on the vocab axis (f32 for an exact fold).
    emb = jnp.zeros((Vp, E), jnp.float32).at[:V].set(params['embedding'])

    # Fold embedding into the conv weight, per tap:
    #   folded[k, v, f] = sum_e emb[v, e] * w_conv[f, e, k]
    folded = jnp.einsum('ve,fek->kvf', emb, params['w_conv'])     # (K, Vp, F)
    wconv = jnp.zeros((K * Vp, Fp), jnp.float32)
    wconv = wconv.at[:, :F].set(folded.reshape(K * Vp, F)).astype(jnp.bfloat16)

    # Fold eval-mode BatchNorm1d into the fc layer, then fold the conv bias
    # into the fc bias (bias is added before a purely linear layer).
    eps = 1e-5
    scale = params['bn_gamma'] / jnp.sqrt(params['bn_var'] + eps)      # (H,)
    shift = params['bn_beta'] - params['bn_mean'] * scale              # (H,)
    wfc_eff = params['w_fc'].T * scale[None, :]                        # (F, H)
    bfc_eff = (params['b_conv'] @ wfc_eff
               + params['b_fc'] * scale + shift)                       # (H,)
    wfc = jnp.zeros((Fp, Hp), jnp.float32).at[:F, :H].set(wfc_eff)
    wfc = wfc.astype(jnp.bfloat16)
    bfc = jnp.zeros((1, Hp), jnp.float32).at[0, :H].set(bfc_eff)

    wlog = jnp.zeros((Hp, Cp), jnp.float32).at[:H, :C].set(params['w_logits'].T)
    wlog = wlog.astype(jnp.bfloat16)
    blog = jnp.zeros((1, Cp), jnp.float32).at[0, :C].set(params['b_logits'])

    return dict(wconv=wconv, wfc=wfc, bfc=bfc, wlog=wlog, blog=blog)


# --------------------------------- forward -----------------------------------
@jax.jit
def textcnn_forward(batch_x, prep):
    """batch_x: (B, L) int32 token ids."""
    B, L = batch_x.shape
    K = config.kernel_size
    C = config.num_classes
    Lout = L - K + 1

    # Pre-shifted ids: ids[b*L + t, k] = batch_x[b, t + k]  (tail padded with 0;
    # those rows are masked to -inf before the pool inside the kernel).
    batch_x = batch_x.astype(jnp.int32)
    taps = [jnp.pad(batch_x[:, k:], ((0, 0), (0, k))) for k in range(K)]
    ids = jnp.stack(taps, axis=-1).reshape(B * L, K)               # (B*L, K)

    kernel = functools.partial(textcnn_kernel, batch=B, lout=Lout)

    KVp, Fp = prep['wconv'].shape
    Hp = prep['wfc'].shape[1]
    Cp = prep['wlog'].shape[1]
    flops = 2 * (B * L * KVp * Fp + B * Fp * Hp + B * Hp * Cp)
    bytes_accessed = (sum(int(v.size) * v.dtype.itemsize for v in prep.values())
                      + ids.size * 4 + B * Cp * 4)

    vmem = pl.BlockSpec(memory_space=pltpu.MemorySpace.VMEM)
    out_full = pl.pallas_call(
        kernel,
        out_shape=jax.ShapeDtypeStruct((B, Cp), jnp.float32),
        in_specs=[vmem] * 6,
        out_specs=vmem,
        cost_estimate=pl.CostEstimate(flops=flops, transcendentals=0,
                                      bytes_accessed=bytes_accessed),
    )(ids, prep['wconv'], prep['wfc'], prep['bfc'], prep['wlog'], prep['blog'])
    return out_full[:, :C]


# --------------------------- pure-JAX reference (f32) ------------------------
def reference_forward(batch_x, params):
    K = config.kernel_size
    L = batch_x.shape[1]
    Lout = L - K + 1
    emb = params['embedding'][batch_x]                             # (B, L, E)
    conv = sum(jnp.einsum('ble,fe->blf', emb[:, k:k + Lout, :],
                          params['w_conv'][:, :, k]) for k in range(K))
    conv = conv + params['b_conv']                                 # (B, Lout, F)
    pool = jnp.max(conv, axis=1)                                   # (B, F)
    fc = pool @ params['w_fc'].T + params['b_fc']
    scale = params['bn_gamma'] / jnp.sqrt(params['bn_var'] + 1e-5)
    bn = (fc - params['bn_mean']) * scale + params['bn_beta']
    relu = jnp.maximum(bn, 0.0)
    return relu @ params['w_logits'].T + params['b_logits']


# --------------------------- deterministic params ----------------------------
def init_params(key):
    E = config.embedding_size
    F = config.num_filters
    H = config.fc_hidden_node
    C = config.num_classes
    K = config.kernel_size
    V = config.vocab_size

    ks = jax.random.split(key, 8)
    return {
        'embedding': jax.random.normal(ks[0], (V, E), jnp.float32) * 0.1,
        'w_conv':    jax.random.normal(ks[1], (F, E, K), jnp.float32) * 0.1,
        'b_conv':    jax.random.normal(ks[2], (F,), jnp.float32) * 0.1,
        'w_fc':      jax.random.normal(ks[3], (H, F), jnp.float32) * 0.1,
        'b_fc':      jax.random.normal(ks[4], (H,), jnp.float32) * 0.1,
        'bn_gamma':  jnp.ones((H,), jnp.float32),
        'bn_beta':   jnp.zeros((H,), jnp.float32),
        'bn_mean':   jnp.zeros((H,), jnp.float32),
        'bn_var':    jnp.ones((H,), jnp.float32),
        'w_logits':  jax.random.normal(ks[5], (C, H), jnp.float32) * 0.1,
        'b_logits':  jax.random.normal(ks[6], (C,), jnp.float32) * 0.1,
    }


# ----------------------------------- main ------------------------------------
if __name__ == "__main__":
    key = jax.random.PRNGKey(0)
    pkey, xkey = jax.random.split(key)
    params = init_params(pkey)
    prep = prepare_params(params)   # one-time weight prep, hoisted out of forward
    batch_x = jax.random.randint(
        xkey, (config.batch, config.seq_len), 0, config.vocab_size, dtype=jnp.int32)

    logits = textcnn_forward(batch_x, prep)
    jax.block_until_ready(logits)
    assert logits.shape == (config.batch, config.num_classes)
    assert bool(jnp.all(jnp.isfinite(logits)))

    # Loose-tolerance sanity check vs. an f32 reference (kernel weights are bf16).
    ref = reference_forward(batch_x, params)
    assert bool(jnp.allclose(logits, ref, rtol=0.0, atol=1e-1)), \
        float(jnp.max(jnp.abs(logits - ref)))

    print("KERNEL_OK")
</pallas_src>

<mosaic_0001>
module attributes {stable_mosaic.version = 11 : i64} {
  func.func @textcnn_kernel(%arg0: memref<128x3xi32, #tpu.memory_space<vmem>>, %arg1: memref<384x128xbf16, #tpu.memory_space<vmem>>, %arg2: memref<128x128xbf16, #tpu.memory_space<vmem>>, %arg3: memref<1x128xf32, #tpu.memory_space<vmem>>, %arg4: memref<128x128xbf16, #tpu.memory_space<vmem>>, %arg5: memref<1x128xf32, #tpu.memory_space<vmem>>, %arg6: memref<8x128xf32, #tpu.memory_space<vmem>>) attributes {dimension_semantics = [], scalar_prefetch = 0 : i64, scratch_operands = 0 : i64, tpu.core_type = #tpu.core_type<tc>} {
    %c0 = arith.constant 0 : index
    %c0_0 = arith.constant 0 : index
    %0 = vector.load %arg0[%c0, %c0_0] : memref<128x3xi32, #tpu.memory_space<vmem>>, vector<128x3xi32>
    %1 = tpu.iota {dimensions = array<i32: 1>} : vector<128x128xi32>
    %2 = vector.extract_strided_slice %0 {offsets = [0, 0], sizes = [128, 1], strides = [1, 1]} : vector<128x3xi32> to vector<128x1xi32>
    %3 = vector.broadcast %2 : vector<128x1xi32> to vector<128x128xi32>
    %4 = arith.cmpi eq, %3, %1 : vector<128x128xi32>
    %5 = arith.extui %4 : vector<128x128xi1> to vector<128x128xi32>
    %6 = arith.sitofp %5 : vector<128x128xi32> to vector<128x128xf32>
    %7 = arith.truncf %6 : vector<128x128xf32> to vector<128x128xbf16>
    %8 = vector.extract_strided_slice %0 {offsets = [0, 1], sizes = [128, 1], strides = [1, 1]} : vector<128x3xi32> to vector<128x1xi32>
    %9 = vector.broadcast %8 : vector<128x1xi32> to vector<128x128xi32>
    %10 = arith.cmpi eq, %9, %1 : vector<128x128xi32>
    %11 = arith.extui %10 : vector<128x128xi1> to vector<128x128xi32>
    %12 = arith.sitofp %11 : vector<128x128xi32> to vector<128x128xf32>
    %13 = arith.truncf %12 : vector<128x128xf32> to vector<128x128xbf16>
    %14 = vector.extract_strided_slice %0 {offsets = [0, 2], sizes = [128, 1], strides = [1, 1]} : vector<128x3xi32> to vector<128x1xi32>
    %15 = vector.broadcast %14 : vector<128x1xi32> to vector<128x128xi32>
    %16 = arith.cmpi eq, %15, %1 : vector<128x128xi32>
    %17 = arith.extui %16 : vector<128x128xi1> to vector<128x128xi32>
    %18 = arith.sitofp %17 : vector<128x128xi32> to vector<128x128xf32>
    %19 = arith.truncf %18 : vector<128x128xf32> to vector<128x128xbf16>
    %20 = tpu.concatenate %7, %13, %19 in 1 : vector<128x128xbf16>, vector<128x128xbf16>, vector<128x128xbf16> -> vector<128x384xbf16>
    %c0_1 = arith.constant 0 : index
    %c0_2 = arith.constant 0 : index
    %21 = vector.load %arg1[%c0_1, %c0_2] : memref<384x128xbf16, #tpu.memory_space<vmem>>, vector<384x128xbf16>
    %cst = arith.constant dense<0.000000e+00> : vector<128x128xf32>
    %22 = tpu.matmul %20, %21, %cst {dimension_numbers = #tpu.dot_dimension_numbers<[1], [0], [0], [1], [0, 0, 1, 1], [], []>} : vector<128x384xbf16>, vector<384x128xbf16>, vector<128x128xf32> -> vector<128x128xf32>
    %23 = vector.shape_cast %22 : vector<128x128xf32> to vector<8x16x128xf32>
    %24 = tpu.iota {dimensions = array<i32: 1>} : vector<8x16x128xi32>
    %c14_i32 = arith.constant 14 : i32
    %25 = vector.broadcast %c14_i32 : i32 to vector<8x16x128xi32>
    %26 = arith.cmpi slt, %24, %25 : vector<8x16x128xi32>
    %cst_3 = arith.constant 0xFF800000 : f32
    %27 = vector.broadcast %cst_3 : f32 to vector<8x16x128xf32>
    %28 = arith.select %26, %23, %27 : vector<8x16x128xi1>, vector<8x16x128xf32>
    %cst_4 = arith.constant dense<0xFF800000> : vector<8x128xf32>
    %29 = vector.multi_reduction <maximumf>, %28, %cst_4 [1] : vector<8x16x128xf32> to vector<8x128xf32>
    %30 = arith.truncf %29 : vector<8x128xf32> to vector<8x128xbf16>
    %c0_5 = arith.constant 0 : index
    %c0_6 = arith.constant 0 : index
    %31 = vector.load %arg2[%c0_5, %c0_6] : memref<128x128xbf16, #tpu.memory_space<vmem>>, vector<128x128xbf16>
    %cst_7 = arith.constant dense<0.000000e+00> : vector<8x128xf32>
    %32 = tpu.matmul %30, %31, %cst_7 {dimension_numbers = #tpu.dot_dimension_numbers<[1], [0], [0], [1], [0, 0, 1, 1], [], []>} : vector<8x128xbf16>, vector<128x128xbf16>, vector<8x128xf32> -> vector<8x128xf32>
    %c0_8 = arith.constant 0 : index
    %c0_9 = arith.constant 0 : index
    %33 = vector.load %arg3[%c0_8, %c0_9] : memref<1x128xf32, #tpu.memory_space<vmem>>, vector<1x128xf32>
    %34 = vector.broadcast %33 : vector<1x128xf32> to vector<8x128xf32>
    %35 = arith.addf %32, %34 : vector<8x128xf32>
    %cst_10 = arith.constant 0.000000e+00 : f32
    %36 = vector.broadcast %cst_10 : f32 to vector<8x128xf32>
    %37 = arith.maximumf %35, %36 : vector<8x128xf32>
    %38 = arith.truncf %37 : vector<8x128xf32> to vector<8x128xbf16>
    %c0_11 = arith.constant 0 : index
    %c0_12 = arith.constant 0 : index
    %39 = vector.load %arg4[%c0_11, %c0_12] : memref<128x128xbf16, #tpu.memory_space<vmem>>, vector<128x128xbf16>
    %cst_13 = arith.constant dense<0.000000e+00> : vector<8x128xf32>
    %40 = tpu.matmul %38, %39, %cst_13 {dimension_numbers = #tpu.dot_dimension_numbers<[1], [0], [0], [1], [0, 0, 1, 1], [], []>} : vector<8x128xbf16>, vector<128x128xbf16>, vector<8x128xf32> -> vector<8x128xf32>
    %c0_14 = arith.constant 0 : index
    %c0_15 = arith.constant 0 : index
    %41 = vector.load %arg5[%c0_14, %c0_15] : memref<1x128xf32, #tpu.memory_space<vmem>>, vector<1x128xf32>
    %42 = vector.broadcast %41 : vector<1x128xf32> to vector<8x128xf32>
    %43 = arith.addf %40, %42 : vector<8x128xf32>
    %c0_16 = arith.constant 0 : index
    %c0_17 = arith.constant 0 : index
    %44 = vector.load %arg6[%c0_16, %c0_17] : memref<8x128xf32, #tpu.memory_space<vmem>>, vector<8x128xf32>
    tpu.vector_store %arg6[%c0_16, %c0_17], %43 {strides = array<i32>} : memref<8x128xf32, #tpu.memory_space<vmem>>, vector<8x128xf32>,
    return
  }
}

</mosaic_0001>

<llo_original>
// kernel: textcnn_forward.1
$region0: #{textcnn_forward.1}
  #allocation0 [shape = 'u32[]', space=smem, size = 0x4, offset = 0x4, fixed_abs, tag = 'smem constant byte address 0x4 - core index']
  #allocation1 [shape = 'u32[144,128]{1,0:T(1,128)}', space=vmem, size = 0x12000, scoped, tag = 'internal scratch']
  %s0 = inlined_call_operand.vmem [shape: s32[128,3], index: 0, kind: input, shape index: {}]
  %s1 = inlined_call_operand.vmem [shape: bf16[384,128], index: 1, kind: input, shape index: {}]
  %s2 = inlined_call_operand.hbm [shape: bf16[128,128], index: 2, kind: input, shape index: {}]
  %s3 = inlined_call_operand.vmem [shape: f32[1,128], index: 3, kind: input, shape index: {}]
  %s4 = inlined_call_operand.hbm [shape: bf16[128,128], index: 4, kind: input, shape index: {}]
  %s5 = inlined_call_operand.vmem [shape: f32[1,128], index: 5, kind: input, shape index: {}]
  %s6 = inlined_call_operand.hbm [shape: f32[8,128], index: 6, kind: output, shape index: {}]
  %s7 = sld [smem:[#allocation0]]
  $region42: #{textcnn_forward.1} parent=0
    _
  %s9 = ssub.s32 1, %s7
  %s10 = scalar_select 0, %s9, %s7
  $region1: #{textcnn_forward.1} parent=0
    #allocation2 [shape = 'u8[32768]{0}', space=vmem, size = 0x8000, scoped, tag = 'input window, operand 2, single buffered']
    #allocation3 [shape = 's32[1]{0}', space=sflag, size = 0x4, scoped, tag = 'scoped memory for textcnn_forward.1']
    #allocation4 [shape = 's32[1]{0}', space=sflag, size = 0x4, scoped, tag = 'scoped memory for textcnn_forward.1']
    #allocation5 [shape = 'u8[32768]{0}', space=vmem, size = 0x8000, scoped, tag = 'input window, operand 4, single buffered']
    #allocation6 [shape = 's32[1]{0}', space=sflag, size = 0x4, scoped, tag = 'scoped memory for textcnn_forward.1']
    #allocation7 [shape = 'u8[4096]{0}', space=vmem, size = 0x1000, scoped, tag = 'output window, operand 0, single buffered']
    %11 = vsyncpa [#allocation3], 0
    %12 = vsyncpa [#allocation6], 0
    %13 = vsyncpa [#allocation4], 0
    // Predicated region
    $region2: #{textcnn_forward.1} parent=1 // pred_check
      _
    $region3: #{textcnn_forward.1} parent=1 // pred_check_branch
      %15 = sbr.rel (0) target = $region5
    $region4: #{textcnn_forward.1} parent=1 // pred_region
      _
    $region5: #{textcnn_forward.1} parent=1 // pred_fallthru
      _
    // Predicated region
    $region6: #{textcnn_forward.1} parent=1 // pred_check
      _
    $region7: #{textcnn_forward.1} parent=1 // pred_check_branch
      %17 = sbr.rel (0) target = $region9
    $region8: #{textcnn_forward.1} parent=1 // pred_region
      _
    $region9: #{textcnn_forward.1} parent=1 // pred_fallthru
      _
    // Predicated region
    $region10: #{textcnn_forward.1} parent=1 // pred_check
      _
    $region11: #{textcnn_forward.1} parent=1 // pred_check_branch
      %19 = sbr.rel (0) target = $region13
    $region12: #{textcnn_forward.1} parent=1 // pred_region
      %s21 = ssub.s32 1024, 1024
      %22 = vsyncadd [#allocation3], %s21
      %s23 = sshll.u32 [#allocation2], 4
      %s24 = int_to_ptr.vmem [resolvable:$true] %s23
      %29 = dma.hbm_to_vmem [thread:$0]  %s2, 1024, %s24, [#allocation3], 64, 64, 4
    $region13: #{textcnn_forward.1} parent=1 // pred_fallthru
      _
    // Predicated region
    $region14: #{textcnn_forward.1} parent=1 // pred_check
      _
    $region15: #{textcnn_forward.1} parent=1 // pred_check_branch
      %31 = sbr.rel (0) target = $region17
    $region16: #{textcnn_forward.1} parent=1 // pred_region
      _
    $region17: #{textcnn_forward.1} parent=1 // pred_fallthru
      _
    // Predicated region
    $region18: #{textcnn_forward.1} parent=1 // pred_check
      _
    $region19: #{textcnn_forward.1} parent=1 // pred_check_branch
      %33 = sbr.rel (0) target = $region21
    $region20: #{textcnn_forward.1} parent=1 // pred_region
      %s35 = ssub.s32 1024, 1024
      %36 = vsyncadd [#allocation6], %s35
      %s37 = sshll.u32 [#allocation5], 4
      %s38 = int_to_ptr.vmem [resolvable:$true] %s37
      %43 = dma.hbm_to_vmem [thread:$0]  %s4, 1024, %s38, [#allocation6], 64, 64, 4
    $region21: #{textcnn_forward.1} parent=1 // pred_fallthru
      _
    // Predicated region
    $region22: #{textcnn_forward.1} parent=1 // pred_check
      _
    $region23: #{textcnn_forward.1} parent=1 // pred_check_branch
      %45 = sbr.rel (0) target = $region25
    $region24: #{textcnn_forward.1} parent=1 // pred_region
      _
    $region25: #{textcnn_forward.1} parent=1 // pred_fallthru
      _
    // Predicated region
    $region26: #{textcnn_forward.1} parent=1 // pred_check
      _
    $region27: #{textcnn_forward.1} parent=1 // pred_check_branch
      %47 = sbr.rel (0) target = $region29
    $region28: #{textcnn_forward.1} parent=1 // pred_region
      %48 = dma.done [#allocation3], 1024
    $region29: #{textcnn_forward.1} parent=1 // pred_fallthru
      _
    // Predicated region
    $region30: #{textcnn_forward.1} parent=1 // pred_check
      _
    $region31: #{textcnn_forward.1} parent=1 // pred_check_branch
      %50 = sbr.rel (0) target = $region33
    $region32: #{textcnn_forward.1} parent=1 // pred_region
      %51 = dma.done [#allocation6], 1024
    $region33: #{textcnn_forward.1} parent=1 // pred_fallthru
      _
    %v53 = vld [vmem:[%s0] sm:$0xff]
    %v54 = vld [vmem:[%s0 + $0x8] sm:$0xff]
    %v55 = vld [vmem:[%s0 + $0x10] sm:$0xff]
    %v56 = vld [vmem:[%s0 + $0x18] sm:$0xff]
    %v57 = vld [vmem:[%s0 + $0x20] sm:$0xff]
    %v58 = vld [vmem:[%s0 + $0x28] sm:$0xff]
    %v59 = vld [vmem:[%s0 + $0x30] sm:$0xff]
    %v60 = vld [vmem:[%s0 + $0x38] sm:$0xff]
    %v61 = vld [vmem:[%s0 + $0x40] sm:$0xff]
    %v62 = vld [vmem:[%s0 + $0x48] sm:$0xff]
    %v63 = vld [vmem:[%s0 + $0x50] sm:$0xff]
    %v64 = vld [vmem:[%s0 + $0x58] sm:$0xff]
    %v65 = vld [vmem:[%s0 + $0x60] sm:$0xff]
    %v66 = vld [vmem:[%s0 + $0x68] sm:$0xff]
    %v67 = vld [vmem:[%s0 + $0x70] sm:$0xff]
    %v68 = vld [vmem:[%s0 + $0x78] sm:$0xff]
    %v69 = vlaneseq
    %v70 = vand.u32 %v69, 127
    %71 = vset.pattern.permute.xlu0 0
    %72 = vperm.xlu0 %71, %v53
    %v73 = vpop.permute.xlu0 %72
    %74 = vset.pattern.permute.xlu0 0
    %75 = vperm.xlu0 %74, %v54
    %v76 = vpop.permute.xlu0 %75
    %77 = vset.pattern.permute.xlu0 0
    %78 = vperm.xlu0 %77, %v55
    %v79 = vpop.permute.xlu0 %78
    %80 = vset.pattern.permute.xlu0 0
    %81 = vperm.xlu0 %80, %v56
    %v82 = vpop.permute.xlu0 %81
    %83 = vset.pattern.permute.xlu0 0
    %84 = vperm.xlu0 %83, %v57
    %v85 = vpop.permute.xlu0 %84
    %86 = vset.pattern.permute.xlu0 0
    %87 = vperm.xlu0 %86, %v58
    %v88 = vpop.permute.xlu0 %87
    %89 = vset.pattern.permute.xlu0 0
    %90 = vperm.xlu0 %89, %v59
    %v91 = vpop.permute.xlu0 %90
    %92 = vset.pattern.permute.xlu0 0
    %93 = vperm.xlu0 %92, %v60
    %v94 = vpop.permute.xlu0 %93
    %95 = vset.pattern.permute.xlu0 0
    %96 = vperm.xlu0 %95, %v61
    %v97 = vpop.permute.xlu0 %96
    %98 = vset.pattern.permute.xlu0 0
    %99 = vperm.xlu0 %98, %v62
    %v100 = vpop.permute.xlu0 %99
    %101 = vset.pattern.permute.xlu0 0
    %102 = vperm.xlu0 %101, %v63
    %v103 = vpop.permute.xlu0 %102
    %104 = vset.pattern.permute.xlu0 0
    %105 = vperm.xlu0 %104, %v64
    %v106 = vpop.permute.xlu0 %105
    %107 = vset.pattern.permute.xlu0 0
    %108 = vperm.xlu0 %107, %v65
    %v109 = vpop.permute.xlu0 %108
    %110 = vset.pattern.permute.xlu0 0
    %111 = vperm.xlu0 %110, %v66
    %v112 = vpop.permute.xlu0 %111
    %113 = vset.pattern.permute.xlu0 0
    %114 = vperm.xlu0 %113, %v67
    %v115 = vpop.permute.xlu0 %114
    %116 = vset.pattern.permute.xlu0 0
    %117 = vperm.xlu0 %116, %v68
    %v118 = vpop.permute.xlu0 %117
    %vm119 = vcmp.eq.s32.totalorder %v73, %v70
    %vm120 = vcmp.eq.s32.totalorder %v76, %v70
    %vm121 = vcmp.eq.s32.totalorder %v79, %v70
    %vm122 = vcmp.eq.s32.totalorder %v82, %v70
    %vm123 = vcmp.eq.s32.totalorder %v85, %v70
    %vm124 = vcmp.eq.s32.totalorder %v88, %v70
    %vm125 = vcmp.eq.s32.totalorder %v91, %v70
    %vm126 = vcmp.eq.s32.totalorder %v94, %v70
    %vm127 = vcmp.eq.s32.totalorder %v97, %v70
    %vm128 = vcmp.eq.s32.totalorder %v100, %v70
    %vm129 = vcmp.eq.s32.totalorder %v103, %v70
    %vm130 = vcmp.eq.s32.totalorder %v106, %v70
    %vm131 = vcmp.eq.s32.totalorder %v109, %v70
    %vm132 = vcmp.eq.s32.totalorder %v112, %v70
    %vm133 = vcmp.eq.s32.totalorder %v115, %v70
    %vm134 = vcmp.eq.s32.totalorder %v118, %v70
    %v135 = vsel %vm119, 1, 0
    %v136 = vsel %vm120, 1, 0
    %v137 = vsel %vm121, 1, 0
    %v138 = vsel %vm122, 1, 0
    %v139 = vsel %vm123, 1, 0
    %v140 = vsel %vm124, 1, 0
    %v141 = vsel %vm125, 1, 0
    %v142 = vsel %vm126, 1, 0
    %v143 = vsel %vm127, 1, 0
    %v144 = vsel %vm128, 1, 0
    %v145 = vsel %vm129, 1, 0
    %v146 = vsel %vm130, 1, 0
    %v147 = vsel %vm131, 1, 0
    %v148 = vsel %vm132, 1, 0
    %v149 = vsel %vm133, 1, 0
    %v150 = vsel %vm134, 1, 0
    %v151 = vcvt.s32.f32 %v135
    %v152 = vcvt.s32.f32 %v136
    %v153 = vcvt.s32.f32 %v137
    %v154 = vcvt.s32.f32 %v138
    %v155 = vcvt.s32.f32 %v139
    %v156 = vcvt.s32.f32 %v140
    %v157 = vcvt.s32.f32 %v141
    %v158 = vcvt.s32.f32 %v142
    %v159 = vcvt.s32.f32 %v143
    %v160 = vcvt.s32.f32 %v144
    %v161 = vcvt.s32.f32 %v145
    %v162 = vcvt.s32.f32 %v146
    %v163 = vcvt.s32.f32 %v147
    %v164 = vcvt.s32.f32 %v148
    %v165 = vcvt.s32.f32 %v149
    %v166 = vcvt.s32.f32 %v150
    %v167 = vpack.c.bf16 %v152, %v151
    %v168 = vpack.c.bf16 %v154, %v153
    %v169 = vpack.c.bf16 %v156, %v155
    %v170 = vpack.c.bf16 %v158, %v157
    %v171 = vpack.c.bf16 %v160, %v159
    %v172 = vpack.c.bf16 %v162, %v161
    %v173 = vpack.c.bf16 %v164, %v163
    %v174 = vpack.c.bf16 %v166, %v165
    %175 = vset.pattern.permute.xlu0 1
    %176 = vperm.xlu0 %175, %v53
    %v177 = vpop.permute.xlu0 %176
    %178 = vset.pattern.permute.xlu0 1
    %179 = vperm.xlu0 %178, %v54
    %v180 = vpop.permute.xlu0 %179
    %181 = vset.pattern.permute.xlu0 1
    %182 = vperm.xlu0 %181, %v55
    %v183 = vpop.permute.xlu0 %182
    %184 = vset.pattern.permute.xlu0 1
    %185 = vperm.xlu0 %184, %v56
    %v186 = vpop.permute.xlu0 %185
    %187 = vset.pattern.permute.xlu0 1
    %188 = vperm.xlu0 %187, %v57
    %v189 = vpop.permute.xlu0 %188
    %190 = vset.pattern.permute.xlu0 1
    %191 = vperm.xlu0 %190, %v58
    %v192 = vpop.permute.xlu0 %191
    %193 = vset.pattern.permute.xlu0 1
    %194 = vperm.xlu0 %193, %v59
    %v195 = vpop.permute.xlu0 %194
    %196 = vset.pattern.permute.xlu0 1
    %197 = vperm.xlu0 %196, %v60
    %v198 = vpop.permute.xlu0 %197
    %199 = vset.pattern.permute.xlu0 1
    %200 = vperm.xlu0 %199, %v61
    %v201 = vpop.permute.xlu0 %200
    %202 = vset.pattern.permute.xlu0 1
    %203 = vperm.xlu0 %202, %v62
    %v204 = vpop.permute.xlu0 %203
    %205 = vset.pattern.permute.xlu0 1
    %206 = vperm.xlu0 %205, %v63
    %v207 = vpop.permute.xlu0 %206
    %208 = vset.pattern.permute.xlu0 1
    %209 = vperm.xlu0 %208, %v64
    %v210 = vpop.permute.xlu0 %209
    %211 = vset.pattern.permute.xlu0 1
    %212 = vperm.xlu0 %211, %v65
    %v213 = vpop.permute.xlu0 %212
    %214 = vset.pattern.permute.xlu0 1
    %215 = vperm.xlu0 %214, %v66
    %v216 = vpop.permute.xlu0 %215
    %217 = vset.pattern.permute.xlu0 1
    %218 = vperm.xlu0 %217, %v67
    %v219 = vpop.permute.xlu0 %218
    %220 = vset.pattern.permute.xlu0 1
    %221 = vperm.xlu0 %220, %v68
    %v222 = vpop.permute.xlu0 %221
    %vm223 = vcmp.eq.s32.totalorder %v177, %v70
    %vm224 = vcmp.eq.s32.totalorder %v180, %v70
    %vm225 = vcmp.eq.s32.totalorder %v183, %v70
    %vm226 = vcmp.eq.s32.totalorder %v186, %v70
    %vm227 = vcmp.eq.s32.totalorder %v189, %v70
    %vm228 = vcmp.eq.s32.totalorder %v192, %v70
    %vm229 = vcmp.eq.s32.totalorder %v195, %v70
    %vm230 = vcmp.eq.s32.totalorder %v198, %v70
    %vm231 = vcmp.eq.s32.totalorder %v201, %v70
    %vm232 = vcmp.eq.s32.totalorder %v204, %v70
    %vm233 = vcmp.eq.s32.totalorder %v207, %v70
    %vm234 = vcmp.eq.s32.totalorder %v210, %v70
    %vm235 = vcmp.eq.s32.totalorder %v213, %v70
    %vm236 = vcmp.eq.s32.totalorder %v216, %v70
    %vm237 = vcmp.eq.s32.totalorder %v219, %v70
    %vm238 = vcmp.eq.s32.totalorder %v222, %v70
    %v239 = vsel %vm223, 1, 0
    %v240 = vsel %vm224, 1, 0
    %v241 = vsel %vm225, 1, 0
    %v242 = vsel %vm226, 1, 0
    %v243 = vsel %vm227, 1, 0
    %v244 = vsel %vm228, 1, 0
    %v245 = vsel %vm229, 1, 0
    %v246 = vsel %vm230, 1, 0
    %v247 = vsel %vm231, 1, 0
    %v248 = vsel %vm232, 1, 0
    %v249 = vsel %vm233, 1, 0
    %v250 = vsel %vm234, 1, 0
    %v251 = vsel %vm235, 1, 0
    %v252 = vsel %vm236, 1, 0
    %v253 = vsel %vm237, 1, 0
    %v254 = vsel %vm238, 1, 0
    %v255 = vcvt.s32.f32 %v239
    %v256 = vcvt.s32.f32 %v240
    %v257 = vcvt.s32.f32 %v241
    %v258 = vcvt.s32.f32 %v242
    %v259 = vcvt.s32.f32 %v243
    %v260 = vcvt.s32.f32 %v244
    %v261 = vcvt.s32.f32 %v245
    %v262 = vcvt.s32.f32 %v246
    %v263 = vcvt.s32.f32 %v247
    %v264 = vcvt.s32.f32 %v248
    %v265 = vcvt.s32.f32 %v249
    %v266 = vcvt.s32.f32 %v250
    %v267 = vcvt.s32.f32 %v251
    %v268 = vcvt.s32.f32 %v252
    %v269 = vcvt.s32.f32 %v253
    %v270 = vcvt.s32.f32 %v254
    %v271 = vpack.c.bf16 %v256, %v255
    %v272 = vpack.c.bf16 %v258, %v257
    %v273 = vpack.c.bf16 %v260, %v259
    %v274 = vpack.c.bf16 %v262, %v261
    %v275 = vpack.c.bf16 %v264, %v263
    %v276 = vpack.c.bf16 %v266, %v265
    %v277 = vpack.c.bf16 %v268, %v267
    %v278 = vpack.c.bf16 %v270, %v269
    %279 = vset.pattern.permute.xlu0 2
    %280 = vperm.xlu0 %279, %v53
    %v281 = vpop.permute.xlu0 %280
    %282 = vset.pattern.permute.xlu0 2
    %283 = vperm.xlu0 %282, %v54
    %v284 = vpop.permute.xlu0 %283
    %285 = vset.pattern.permute.xlu0 2
    %286 = vperm.xlu0 %285, %v55
    %v287 = vpop.permute.xlu0 %286
    %288 = vset.pattern.permute.xlu0 2
    %289 = vperm.xlu0 %288, %v56
    %v290 = vpop.permute.xlu0 %289
    %291 = vset.pattern.permute.xlu0 2
    %292 = vperm.xlu0 %291, %v57
    %v293 = vpop.permute.xlu0 %292
    %294 = vset.pattern.permute.xlu0 2
    %295 = vperm.xlu0 %294, %v58
    %v296 = vpop.permute.xlu0 %295
    %297 = vset.pattern.permute.xlu0 2
    %298 = vperm.xlu0 %297, %v59
    %v299 = vpop.permute.xlu0 %298
    %300 = vset.pattern.permute.xlu0 2
    %301 = vperm.xlu0 %300, %v60
    %v302 = vpop.permute.xlu0 %301
    %303 = vset.pattern.permute.xlu0 2
    %304 = vperm.xlu0 %303, %v61
    %v305 = vpop.permute.xlu0 %304
    %306 = vset.pattern.permute.xlu0 2
    %307 = vperm.xlu0 %306, %v62
    %v308 = vpop.permute.xlu0 %307
    %309 = vset.pattern.permute.xlu0 2
    %310 = vperm.xlu0 %309, %v63
    %v311 = vpop.permute.xlu0 %310
    %312 = vset.pattern.permute.xlu0 2
    %313 = vperm.xlu0 %312, %v64
    %v314 = vpop.permute.xlu0 %313
    %315 = vset.pattern.permute.xlu0 2
    %316 = vperm.xlu0 %315, %v65
    %v317 = vpop.permute.xlu0 %316
    %318 = vset.pattern.permute.xlu0 2
    %319 = vperm.xlu0 %318, %v66
    %v320 = vpop.permute.xlu0 %319
    %321 = vset.pattern.permute.xlu0 2
    %322 = vperm.xlu0 %321, %v67
    %v323 = vpop.permute.xlu0 %322
    %324 = vset.pattern.permute.xlu0 2
    %325 = vperm.xlu0 %324, %v68
    %v326 = vpop.permute.xlu0 %325
    %vm327 = vcmp.eq.s32.totalorder %v281, %v70
    %vm328 = vcmp.eq.s32.totalorder %v284, %v70
    %vm329 = vcmp.eq.s32.totalorder %v287, %v70
    %vm330 = vcmp.eq.s32.totalorder %v290, %v70
    %vm331 = vcmp.eq.s32.totalorder %v293, %v70
    %vm332 = vcmp.eq.s32.totalorder %v296, %v70
    %vm333 = vcmp.eq.s32.totalorder %v299, %v70
    %vm334 = vcmp.eq.s32.totalorder %v302, %v70
    %vm335 = vcmp.eq.s32.totalorder %v305, %v70
    %vm336 = vcmp.eq.s32.totalorder %v308, %v70
    %vm337 = vcmp.eq.s32.totalorder %v311, %v70
    %vm338 = vcmp.eq.s32.totalorder %v314, %v70
    %vm339 = vcmp.eq.s32.totalorder %v317, %v70
    %vm340 = vcmp.eq.s32.totalorder %v320, %v70
    %vm341 = vcmp.eq.s32.totalorder %v323, %v70
    %vm342 = vcmp.eq.s32.totalorder %v326, %v70
    %v343 = vsel %vm327, 1, 0
    %v344 = vsel %vm328, 1, 0
    %v345 = vsel %vm329, 1, 0
    %v346 = vsel %vm330, 1, 0
    %v347 = vsel %vm331, 1, 0
    %v348 = vsel %vm332, 1, 0
    %v349 = vsel %vm333, 1, 0
    %v350 = vsel %vm334, 1, 0
    %v351 = vsel %vm335, 1, 0
    %v352 = vsel %vm336, 1, 0
    %v353 = vsel %vm337, 1, 0
    %v354 = vsel %vm338, 1, 0
    %v355 = vsel %vm339, 1, 0
    %v356 = vsel %vm340, 1, 0
    %v357 = vsel %vm341, 1, 0
    %v358 = vsel %vm342, 1, 0
    %v359 = vcvt.s32.f32 %v343
    %v360 = vcvt.s32.f32 %v344
    %v361 = vcvt.s32.f32 %v345
    %v362 = vcvt.s32.f32 %v346
    %v363 = vcvt.s32.f32 %v347
    %v364 = vcvt.s32.f32 %v348
    %v365 = vcvt.s32.f32 %v349
    %v366 = vcvt.s32.f32 %v350
    %v367 = vcvt.s32.f32 %v351
    %v368 = vcvt.s32.f32 %v352
    %v369 = vcvt.s32.f32 %v353
    %v370 = vcvt.s32.f32 %v354
    %v371 = vcvt.s32.f32 %v355
    %v372 = vcvt.s32.f32 %v356
    %v373 = vcvt.s32.f32 %v357
    %v374 = vcvt.s32.f32 %v358
    %v375 = vpack.c.bf16 %v360, %v359
    %v376 = vpack.c.bf16 %v362, %v361
    %v377 = vpack.c.bf16 %v364, %v363
    %v378 = vpack.c.bf16 %v366, %v365
    %v379 = vpack.c.bf16 %v368, %v367
    %v380 = vpack.c.bf16 %v370, %v369
    %v381 = vpack.c.bf16 %v372, %v371
    %v382 = vpack.c.bf16 %v374, %v373
    %v383 = vld [vmem:[%s1] sm:$0xf]
    %v384 = vld [vmem:[%s1 + $0x4] sm:$0xf]
    %v385 = vld [vmem:[%s1 + $0x8] sm:$0xf]
    %v386 = vld [vmem:[%s1 + $0xc] sm:$0xf]
    %v387 = vld [vmem:[%s1 + $0x10] sm:$0xf]
    %v388 = vld [vmem:[%s1 + $0x14] sm:$0xf]
    %v389 = vld [vmem:[%s1 + $0x18] sm:$0xf]
    %v390 = vld [vmem:[%s1 + $0x1c] sm:$0xf]
    %v391 = vld [vmem:[%s1 + $0x20] sm:$0xf]
    %v392 = vld [vmem:[%s1 + $0x24] sm:$0xf]
    %v393 = vld [vmem:[%s1 + $0x28] sm:$0xf]
    %v394 = vld [vmem:[%s1 + $0x2c] sm:$0xf]
    %v395 = vld [vmem:[%s1 + $0x30] sm:$0xf]
    %v396 = vld [vmem:[%s1 + $0x34] sm:$0xf]
    %v397 = vld [vmem:[%s1 + $0x38] sm:$0xf]
    %v398 = vld [vmem:[%s1 + $0x3c] sm:$0xf]
    %v399 = vld [vmem:[%s1 + $0x40] sm:$0xf]
    %v400 = vld [vmem:[%s1 + $0x44] sm:$0xf]
    %v401 = vld [vmem:[%s1 + $0x48] sm:$0xf]
    %v402 = vld [vmem:[%s1 + $0x4c] sm:$0xf]
    %v403 = vld [vmem:[%s1 + $0x50] sm:$0xf]
    %v404 = vld [vmem:[%s1 + $0x54] sm:$0xf]
    %v405 = vld [vmem:[%s1 + $0x58] sm:$0xf]
    %v406 = vld [vmem:[%s1 + $0x5c] sm:$0xf]
    %v407 = vld [vmem:[%s1 + $0x60] sm:$0xf]
    %v408 = vld [vmem:[%s1 + $0x64] sm:$0xf]
    %v409 = vld [vmem:[%s1 + $0x68] sm:$0xf]
    %v410 = vld [vmem:[%s1 + $0x6c] sm:$0xf]
    %v411 = vld [vmem:[%s1 + $0x70] sm:$0xf]
    %v412 = vld [vmem:[%s1 + $0x74] sm:$0xf]
    %v413 = vld [vmem:[%s1 + $0x78] sm:$0xf]
    %v414 = vld [vmem:[%s1 + $0x7c] sm:$0xf]
    %v415 = vld [vmem:[%s1 + $0x80] sm:$0xf]
    %v416 = vld [vmem:[%s1 + $0x84] sm:$0xf]
    %v417 = vld [vmem:[%s1 + $0x88] sm:$0xf]
    %v418 = vld [vmem:[%s1 + $0x8c] sm:$0xf]
    %v419 = vld [vmem:[%s1 + $0x90] sm:$0xf]
    %v420 = vld [vmem:[%s1 + $0x94] sm:$0xf]
    %v421 = vld [vmem:[%s1 + $0x98] sm:$0xf]
    %v422 = vld [vmem:[%s1 + $0x9c] sm:$0xf]
    %v423 = vld [vmem:[%s1 + $0xa0] sm:$0xf]
    %v424 = vld [vmem:[%s1 + $0xa4] sm:$0xf]
    %v425 = vld [vmem:[%s1 + $0xa8] sm:$0xf]
    %v426 = vld [vmem:[%s1 + $0xac] sm:$0xf]
    %v427 = vld [vmem:[%s1 + $0xb0] sm:$0xf]
    %v428 = vld [vmem:[%s1 + $0xb4] sm:$0xf]
    %v429 = vld [vmem:[%s1 + $0xb8] sm:$0xf]
    %v430 = vld [vmem:[%s1 + $0xbc] sm:$0xf]
    %v479 = vunpack.c.l.b16 %v383
    %v480 = vunpack.c.l.b16 %v384
    %v481 = vunpack.c.l.b16 %v385
    %v482 = vunpack.c.l.b16 %v386
    %v483 = vunpack.c.l.b16 %v387
    %v484 = vunpack.c.l.b16 %v388
    %v485 = vunpack.c.l.b16 %v389
    %v486 = vunpack.c.l.b16 %v390
    %v487 = vunpack.c.l.b16 %v391
    %v488 = vunpack.c.l.b16 %v392
    %v489 = vunpack.c.l.b16 %v393
    %v490 = vunpack.c.l.b16 %v394
    %v491 = vunpack.c.l.b16 %v395
    %v492 = vunpack.c.l.b16 %v396
    %v493 = vunpack.c.l.b16 %v397
    %v494 = vunpack.c.l.b16 %v398
    %v495 = vunpack.c.l.b16 %v399
    %v496 = vunpack.c.l.b16 %v400
    %v497 = vunpack.c.l.b16 %v401
    %v498 = vunpack.c.l.b16 %v402
    %v499 = vunpack.c.l.b16 %v403
    %v500 = vunpack.c.l.b16 %v404
    %v501 = vunpack.c.l.b16 %v405
    %v502 = vunpack.c.l.b16 %v406
    %v503 = vunpack.c.l.b16 %v407
    %v504 = vunpack.c.l.b16 %v408
    %v505 = vunpack.c.l.b16 %v409
    %v506 = vunpack.c.l.b16 %v410
    %v507 = vunpack.c.l.b16 %v411
    %v508 = vunpack.c.l.b16 %v412
    %v509 = vunpack.c.l.b16 %v413
    %v510 = vunpack.c.l.b16 %v414
    %v511 = vunpack.c.l.b16 %v415
    %v512 = vunpack.c.l.b16 %v416
    %v513 = vunpack.c.l.b16 %v417
    %v514 = vunpack.c.l.b16 %v418
    %v515 = vunpack.c.l.b16 %v419
    %v516 = vunpack.c.l.b16 %v420
    %v517 = vunpack.c.l.b16 %v421
    %v518 = vunpack.c.l.b16 %v422
    %v519 = vunpack.c.l.b16 %v423
    %v520 = vunpack.c.l.b16 %v424
    %v521 = vunpack.c.l.b16 %v425
    %v522 = vunpack.c.l.b16 %v426
    %v523 = vunpack.c.l.b16 %v427
    %v524 = vunpack.c.l.b16 %v428
    %v525 = vunpack.c.l.b16 %v429
    %v526 = vunpack.c.l.b16 %v430
    %v527 = vpack.c.b16 %v480, %v479
    %v528 = vpack.c.b16 %v482, %v481
    %v529 = vpack.c.b16 %v484, %v483
    %v530 = vpack.c.b16 %v486, %v485
    %v531 = vpack.c.b16 %v488, %v487
    %v532 = vpack.c.b16 %v490, %v489
    %v533 = vpack.c.b16 %v492, %v491
    %v534 = vpack.c.b16 %v494, %v493
    %v535 = vpack.c.b16 %v496, %v495
    %v536 = vpack.c.b16 %v498, %v497
    %v537 = vpack.c.b16 %v500, %v499
    %v538 = vpack.c.b16 %v502, %v501
    %v539 = vpack.c.b16 %v504, %v503
    %v540 = vpack.c.b16 %v506, %v505
    %v541 = vpack.c.b16 %v508, %v507
    %v542 = vpack.c.b16 %v510, %v509
    %v543 = vpack.c.b16 %v512, %v511
    %v544 = vpack.c.b16 %v514, %v513
    %v545 = vpack.c.b16 %v516, %v515
    %v546 = vpack.c.b16 %v518, %v517
    %v547 = vpack.c.b16 %v520, %v519
    %v548 = vpack.c.b16 %v522, %v521
    %v549 = vpack.c.b16 %v524, %v523
    %v550 = vpack.c.b16 %v526, %v525
    %575 = vmatprep.subr.bf16.mxu0 0
    %576 = vmatpush1.bf16.msra.mxu0 %v534
    %577 = vmatprep.subr.bf16.mxu0 0
    %578 = vmatpush1.bf16.msra.mxu0 %v533
    %579 = vmatprep.subr.bf16.mxu0 0
    %580 = vmatpush1.bf16.msra.mxu0 %v532
    %581 = vmatprep.subr.bf16.mxu0 0
    %582 = vmatpush1.bf16.msra.mxu0 %v531
    %583 = vmatprep.subr.bf16.mxu0 0
    %584 = vmatpush1.bf16.msra.mxu0 %v530
    %585 = vmatprep.subr.bf16.mxu0 0
    %586 = vmatpush1.bf16.msra.mxu0 %v529
    %587 = vmatprep.subr.bf16.mxu0 0
    %588 = vmatpush1.bf16.msra.mxu0 %v528
    %589 = vmatprep.subr.bf16.mxu0 0
    %590 = vmatpush1.bf16.msra.mxu0 %v527
    %591 = vmatprep.subr.bf16.mxu0 0
    %592 = vmatpush2.bf16.msra.mxu0 %v542
    %593 = vmatprep.subr.bf16.mxu0 0
    %594 = vmatpush2.bf16.msra.mxu0 %v541
    %595 = vmatprep.subr.bf16.mxu0 0
    %596 = vmatpush2.bf16.msra.mxu0 %v540
    %597 = vmatprep.subr.bf16.mxu0 0
    %598 = vmatpush2.bf16.msra.mxu0 %v539
    %599 = vmatprep.subr.bf16.mxu0 0
    %600 = vmatpush2.bf16.msra.mxu0 %v538
    %601 = vmatprep.subr.bf16.mxu0 0
    %602 = vmatpush2.bf16.msra.mxu0 %v537
    %603 = vmatprep.subr.bf16.mxu0 0
    %604 = vmatpush2.bf16.msra.mxu0 %v536
    %605 = vmatprep.subr.bf16.mxu0 0
    %606 = vmatpush2.bf16.msra.mxu0 %v535
    %607 = vmatprep.mubr.bf16.mxu0 %v271
    %608 = vmatmul.mubr.bf16.gmra.mxu0 %v167
    %v609 = vpop.f32.mrf.mxu0
    %v610 = vadd.f32 0.0, %v609
    %v611 = vpop.f32.mrf.mxu0
    %v612 = vpop.f32.mrf.mxu0
    %v613 = vadd.f32 0.0, %v612
    %v614 = vpop.f32.mrf.mxu0
    %615 = vmatprep.mubr.bf16.mxu0 %v272
    %616 = vmatmul.mubr.bf16.gmra.mxu0 %v168
    %v617 = vpop.f32.mrf.mxu0
    %v618 = vadd.f32 0.0, %v617
    %v619 = vpop.f32.mrf.mxu0
    %v620 = vpop.f32.mrf.mxu0
    %v621 = vadd.f32 0.0, %v620
    %v622 = vpop.f32.mrf.mxu0
    %623 = vmatprep.mubr.bf16.mxu0 %v273
    %624 = vmatmul.mubr.bf16.gmra.mxu0 %v169
    %v625 = vpop.f32.mrf.mxu0
    %v626 = vadd.f32 0.0, %v625
    %v627 = vpop.f32.mrf.mxu0
    %v628 = vpop.f32.mrf.mxu0
    %v629 = vadd.f32 0.0, %v628
    %v630 = vpop.f32.mrf.mxu0
    %631 = vmatprep.mubr.bf16.mxu0 %v274
    %632 = vmatmul.mubr.bf16.gmra.mxu0 %v170
    %v633 = vpop.f32.mrf.mxu0
    %v634 = vadd.f32 0.0, %v633
    %v635 = vpop.f32.mrf.mxu0
    %v636 = vpop.f32.mrf.mxu0
    %v637 = vadd.f32 0.0, %v636
    %v638 = vpop.f32.mrf.mxu0
    %639 = vmatprep.mubr.bf16.mxu0 %v275
    %640 = vmatmul.mubr.bf16.gmra.mxu0 %v171
    %v641 = vpop.f32.mrf.mxu0
    %v642 = vadd.f32 0.0, %v641
    %v643 = vpop.f32.mrf.mxu0
    %v644 = vpop.f32.mrf.mxu0
    %v645 = vadd.f32 0.0, %v644
    %v646 = vpop.f32.mrf.mxu0
    %647 = vmatprep.mubr.bf16.mxu0 %v276
    %648 = vmatmul.mubr.bf16.gmra.mxu0 %v172
    %v649 = vpop.f32.mrf.mxu0
    %v650 = vadd.f32 0.0, %v649
    %v651 = vpop.f32.mrf.mxu0
    %v652 = vpop.f32.mrf.mxu0
    %v653 = vadd.f32 0.0, %v652
    %v654 = vpop.f32.mrf.mxu0
    %655 = vmatprep.mubr.bf16.mxu0 %v277
    %656 = vmatmul.mubr.bf16.gmra.mxu0 %v173
    %v657 = vpop.f32.mrf.mxu0
    %v658 = vadd.f32 0.0, %v657
    %v659 = vpop.f32.mrf.mxu0
    %v660 = vpop.f32.mrf.mxu0
    %v661 = vadd.f32 0.0, %v660
    %v662 = vpop.f32.mrf.mxu0
    %663 = vmatprep.mubr.bf16.mxu0 %v278
    %664 = vmatmul.mubr.bf16.gmra.mxu0 %v174
    %v665 = vpop.f32.mrf.mxu0
    %v666 = vadd.f32 0.0, %v665
    %v667 = vpop.f32.mrf.mxu0
    %v668 = vpop.f32.mrf.mxu0
    %v669 = vadd.f32 0.0, %v668
    %v670 = vpop.f32.mrf.mxu0
    %671 = vdwg.mxu0
    %672 = vmatprep.subr.bf16.mxu0 0
    %673 = vmatpush1.bf16.msra.mxu0 %v550
    %674 = vmatprep.subr.bf16.mxu0 0
    %675 = vmatpush1.bf16.msra.mxu0 %v549
    %676 = vmatprep.subr.bf16.mxu0 0
    %677 = vmatpush1.bf16.msra.mxu0 %v548
    %678 = vmatprep.subr.bf16.mxu0 0
    %679 = vmatpush1.bf16.msra.mxu0 %v547
    %680 = vmatprep.subr.bf16.mxu0 0
    %681 = vmatpush1.bf16.msra.mxu0 %v546
    %682 = vmatprep.subr.bf16.mxu0 0
    %683 = vmatpush1.bf16.msra.mxu0 %v545
    %684 = vmatprep.subr.bf16.mxu0 0
    %685 = vmatpush1.bf16.msra.mxu0 %v544
    %686 = vmatprep.subr.bf16.mxu0 0
    %687 = vmatpush1.bf16.msra.mxu0 %v543
    %688 = vmatprep.subr.bf16.mxu0 0
    %689 = vmatpush2.bf16.msra.mxu0 0
    %690 = vmatprep.subr.bf16.mxu0 0
    %691 = vmatpush2.bf16.msra.mxu0 0
    %692 = vmatprep.subr.bf16.mxu0 0
    %693 = vmatpush2.bf16.msra.mxu0 0
    %694 = vmatprep.subr.bf16.mxu0 0
    %695 = vmatpush2.bf16.msra.mxu0 0
    %696 = vmatprep.subr.bf16.mxu0 0
    %697 = vmatpush2.bf16.msra.mxu0 0
    %698 = vmatprep.subr.bf16.mxu0 0
    %699 = vmatpush2.bf16.msra.mxu0 0
    %700 = vmatprep.subr.bf16.mxu0 0
    %701 = vmatpush2.bf16.msra.mxu0 0
    %702 = vmatprep.subr.bf16.mxu0 0
    %703 = vmatpush2.bf16.msra.mxu0 0
    %704 = vmatprep.mubr.bf16.mxu0 0
    %705 = vmatmul.mubr.bf16.gmra.mxu0 %v375
    %v706 = vpop.f32.mrf.mxu0
    %v707 = vadd.f32 %v610, %v706
    %v708 = vpop.f32.mrf.mxu0
    %v709 = vpop.f32.mrf.mxu0
    %v710 = vadd.f32 %v613, %v709
    %v711 = vpop.f32.mrf.mxu0
    %712 = vmatprep.mubr.bf16.mxu0 0
    %713 = vmatmul.mubr.bf16.gmra.mxu0 %v376
    %v714 = vpop.f32.mrf.mxu0
    %v715 = vadd.f32 %v618, %v714
    %v716 = vpop.f32.mrf.mxu0
    %v717 = vpop.f32.mrf.mxu0
    %v718 = vadd.f32 %v621, %v717
    %v719 = vpop.f32.mrf.mxu0
    %720 = vmatprep.mubr.bf16.mxu0 0
    %721 = vmatmul.mubr.bf16.gmra.mxu0 %v377
    %v722 = vpop.f32.mrf.mxu0
    %v723 = vadd.f32 %v626, %v722
    %v724 = vpop.f32.mrf.mxu0
    %v725 = vpop.f32.mrf.mxu0
    %v726 = vadd.f32 %v629, %v725
    %v727 = vpop.f32.mrf.mxu0
    %728 = vmatprep.mubr.bf16.mxu0 0
    %729 = vmatmul.mubr.bf16.gmra.mxu0 %v378
    %v730 = vpop.f32.mrf.mxu0
    %v731 = vadd.f32 %v634, %v730
    %v732 = vpop.f32.mrf.mxu0
    %v733 = vpop.f32.mrf.mxu0
    %v734 = vadd.f32 %v637, %v733
    %v735 = vpop.f32.mrf.mxu0
    %736 = vmatprep.mubr.bf16.mxu0 0
    %737 = vmatmul.mubr.bf16.gmra.mxu0 %v379
    %v738 = vpop.f32.mrf.mxu0
    %v739 = vadd.f32 %v642, %v738
    %v740 = vpop.f32.mrf.mxu0
    %v741 = vpop.f32.mrf.mxu0
    %v742 = vadd.f32 %v645, %v741
    %v743 = vpop.f32.mrf.mxu0
    %744 = vmatprep.mubr.bf16.mxu0 0
    %745 = vmatmul.mubr.bf16.gmra.mxu0 %v380
    %v746 = vpop.f32.mrf.mxu0
    %v747 = vadd.f32 %v650, %v746
    %v748 = vpop.f32.mrf.mxu0
    %v749 = vpop.f32.mrf.mxu0
    %v750 = vadd.f32 %v653, %v749
    %v751 = vpop.f32.mrf.mxu0
    %752 = vmatprep.mubr.bf16.mxu0 0
    %753 = vmatmul.mubr.bf16.gmra.mxu0 %v381
    %v754 = vpop.f32.mrf.mxu0
    %v755 = vadd.f32 %v658, %v754
    %v756 = vpop.f32.mrf.mxu0
    %v757 = vpop.f32.mrf.mxu0
    %v758 = vadd.f32 %v661, %v757
    %v759 = vpop.f32.mrf.mxu0
    %760 = vmatprep.mubr.bf16.mxu0 0
    %761 = vmatmul.mubr.bf16.gmra.mxu0 %v382
    %v762 = vpop.f32.mrf.mxu0
    %v763 = vadd.f32 %v666, %v762
    %v764 = vpop.f32.mrf.mxu0
    %v765 = vpop.f32.mrf.mxu0
    %v766 = vadd.f32 %v669, %v765
    %v767 = vpop.f32.mrf.mxu0
    %768 = vdwg.mxu0
    %v769 = vlaneseq
    %v770 = vshrl.u32 %v769, 7
    %v771 = vadd.s32 %v770, 8
    %vm772 = vcmp.lt.s32.totalorder %v770, 14
    %vm773 = vcmp.lt.s32.totalorder %v771, 14
    %v774 = vsel %vm772, %v707, -inf
    %v775 = vsel %vm773, %v710, -inf
    %v776 = vsel %vm772, %v715, -inf
    %v777 = vsel %vm773, %v718, -inf
    %v778 = vsel %vm772, %v723, -inf
    %v779 = vsel %vm773, %v726, -inf
    %v780 = vsel %vm772, %v731, -inf
    %v781 = vsel %vm773, %v734, -inf
    %v782 = vsel %vm772, %v739, -inf
    %v783 = vsel %vm773, %v742, -inf
    %v784 = vsel %vm772, %v747, -inf
    %v785 = vsel %vm773, %v750, -inf
    %v786 = vsel %vm772, %v755, -inf
    %v787 = vsel %vm773, %v758, -inf
    %v788 = vsel %vm772, %v763, -inf
    %v789 = vsel %vm773, %v766, -inf
    %v790 = vmax.f32 %v774, %v775
    %v791 = vrot.slane %v790, 4
    %v792 = vmax.f32 %v790, %v791
    %v793 = vrot.slane %v792, 2
    %v794 = vmax.f32 %v792, %v793
    %v795 = vrot.slane %v794, 1
    %v796 = vmax.f32 %v794, %v795
    %v797 = vmax.f32 %v776, %v777
    %v798 = vrot.slane %v797, 4
    %v799 = vmax.f32 %v797, %v798
    %v800 = vrot.slane %v799, 2
    %v801 = vmax.f32 %v799, %v800
    %v802 = vrot.slane %v801, 1
    %v803 = vmax.f32 %v801, %v802
    %v804 = vmax.f32 %v778, %v779
    %v805 = vrot.slane %v804, 4
    %v806 = vmax.f32 %v804, %v805
    %v807 = vrot.slane %v806, 2
    %v808 = vmax.f32 %v806, %v807
    %v809 = vrot.slane %v808, 1
    %v810 = vmax.f32 %v808, %v809
    %v811 = vmax.f32 %v780, %v781
    %v812 = vrot.slane %v811, 4
    %v813 = vmax.f32 %v811, %v812
    %v814 = vrot.slane %v813, 2
    %v815 = vmax.f32 %v813, %v814
    %v816 = vrot.slane %v815, 1
    %v817 = vmax.f32 %v815, %v816
    %v818 = vmax.f32 %v782, %v783
    %v819 = vrot.slane %v818, 4
    %v820 = vmax.f32 %v818, %v819
    %v821 = vrot.slane %v820, 2
    %v822 = vmax.f32 %v820, %v821
    %v823 = vrot.slane %v822, 1
    %v824 = vmax.f32 %v822, %v823
    %v825 = vmax.f32 %v784, %v785
    %v826 = vrot.slane %v825, 4
    %v827 = vmax.f32 %v825, %v826
    %v828 = vrot.slane %v827, 2
    %v829 = vmax.f32 %v827, %v828
    %v830 = vrot.slane %v829, 1
    %v831 = vmax.f32 %v829, %v830
    %v832 = vmax.f32 %v786, %v787
    %v833 = vrot.slane %v832, 4
    %v834 = vmax.f32 %v832, %v833
    %v835 = vrot.slane %v834, 2
    %v836 = vmax.f32 %v834, %v835
    %v837 = vrot.slane %v836, 1
    %v838 = vmax.f32 %v836, %v837
    %v839 = vmax.f32 %v788, %v789
    %v840 = vrot.slane %v839, 4
    %v841 = vmax.f32 %v839, %v840
    %v842 = vrot.slane %v841, 2
    %v843 = vmax.f32 %v841, %v842
    %v844 = vrot.slane %v843, 1
    %v845 = vmax.f32 %v843, %v844
    %v846 = vpack.c.bf16 %v796, %v796
    %v847 = vpack.c.bf16 %v803, %v803
    %v848 = vpack.c.bf16 %v810, %v810
    %v849 = vpack.c.bf16 %v817, %v817
    %v850 = vpack.c.bf16 %v824, %v824
    %v851 = vpack.c.bf16 %v831, %v831
    %v852 = vpack.c.bf16 %v838, %v838
    %v853 = vpack.c.bf16 %v845, %v845
    %v854 = vld [vmem:[#allocation2] sm:$0xf]
    %v855 = vld [vmem:[#allocation2 + $0x4] sm:$0xf]
    %v856 = vld [vmem:[#allocation2 + $0x8] sm:$0xf]
    %v857 = vld [vmem:[#allocation2 + $0xc] sm:$0xf]
    %v858 = vld [vmem:[#allocation2 + $0x10] sm:$0xf]
    %v859 = vld [vmem:[#allocation2 + $0x14] sm:$0xf]
    %v860 = vld [vmem:[#allocation2 + $0x18] sm:$0xf]
    %v861 = vld [vmem:[#allocation2 + $0x1c] sm:$0xf]
    %v862 = vld [vmem:[#allocation2 + $0x20] sm:$0xf]
    %v863 = vld [vmem:[#allocation2 + $0x24] sm:$0xf]
    %v864 = vld [vmem:[#allocation2 + $0x28] sm:$0xf]
    %v865 = vld [vmem:[#allocation2 + $0x2c] sm:$0xf]
    %v866 = vld [vmem:[#allocation2 + $0x30] sm:$0xf]
    %v867 = vld [vmem:[#allocation2 + $0x34] sm:$0xf]
    %v868 = vld [vmem:[#allocation2 + $0x38] sm:$0xf]
    %v869 = vld [vmem:[#allocation2 + $0x3c] sm:$0xf]
    %v870 = vld [vmem:[%s3] sm:$0x1]
    %v872 = vlaneseq
    %v873 = vshrl.u32 %v872, 7
    %v874 = vsub.s32 0, %v873
    %v875 = vrot.slane %v870, %v874
    %v885 = vunpack.c.l.b16 %v846
    %v886 = vunpack.c.l.b16 %v847
    %v887 = vunpack.c.l.b16 %v848
    %v888 = vunpack.c.l.b16 %v849
    %v889 = vunpack.c.l.b16 %v850
    %v890 = vunpack.c.l.b16 %v851
    %v891 = vunpack.c.l.b16 %v852
    %v892 = vunpack.c.l.b16 %v853
    %vm893 = vcmask 1041409
    %v894 = vsel %vm893, %v886, %v885
    %vm895 = vcmask 1042434
    %v896 = vsel %vm895, %v887, %v894
    %vm897 = vcmask 1043459
    %v898 = vsel %vm897, %v888, %v896
    %vm899 = vcmask 1044484
    %v900 = vsel %vm899, %v889, %v898
    %vm901 = vcmask 1045509
    %v902 = vsel %vm901, %v890, %v900
    %vm903 = vcmask 1046534
    %v904 = vsel %vm903, %v891, %v902
    %vm905 = vcmask 1047559
    %v906 = vsel %vm905, %v892, %v904
    %v907 = vpack.c.b16 %v906, %v906
    %v925 = vunpack.c.l.b16 %v854
    %v926 = vunpack.c.l.b16 %v855
    %v927 = vunpack.c.l.b16 %v856
    %v928 = vunpack.c.l.b16 %v857
    %v929 = vunpack.c.l.b16 %v858
    %v930 = vunpack.c.l.b16 %v859
    %v931 = vunpack.c.l.b16 %v860
    %v932 = vunpack.c.l.b16 %v861
    %v933 = vunpack.c.l.b16 %v862
    %v934 = vunpack.c.l.b16 %v863
    %v935 = vunpack.c.l.b16 %v864
    %v936 = vunpack.c.l.b16 %v865
    %v937 = vunpack.c.l.b16 %v866
    %v938 = vunpack.c.l.b16 %v867
    %v939 = vunpack.c.l.b16 %v868
    %v940 = vunpack.c.l.b16 %v869
    %v941 = vpack.c.b16 %v926, %v925
    %v942 = vpack.c.b16 %v928, %v927
    %v943 = vpack.c.b16 %v930, %v929
    %v944 = vpack.c.b16 %v932, %v931
    %v945 = vpack.c.b16 %v934, %v933
    %v946 = vpack.c.b16 %v936, %v935
    %v947 = vpack.c.b16 %v938, %v937
    %v948 = vpack.c.b16 %v940, %v939
    %957 = vmatprep.subr.bf16.mxu0 0
    %958 = vmatpush1.bf16.msra.mxu0 %v948
    %959 = vmatprep.subr.bf16.mxu0 0
    %960 = vmatpush1.bf16.msra.mxu0 %v947
    %961 = vmatprep.subr.bf16.mxu0 0
    %962 = vmatpush1.bf16.msra.mxu0 %v946
    %963 = vmatprep.subr.bf16.mxu0 0
    %964 = vmatpush1.bf16.msra.mxu0 %v945
    %965 = vmatprep.subr.bf16.mxu0 0
    %966 = vmatpush1.bf16.msra.mxu0 %v944
    %967 = vmatprep.subr.bf16.mxu0 0
    %968 = vmatpush1.bf16.msra.mxu0 %v943
    %969 = vmatprep.subr.bf16.mxu0 0
    %970 = vmatpush1.bf16.msra.mxu0 %v942
    %971 = vmatprep.subr.bf16.mxu0 0
    %972 = vmatpush1.bf16.msra.mxu0 %v941
    %973 = vmatprep.subr.bf16.mxu0 0
    %974 = vmatpush2.bf16.msra.mxu0 0
    %975 = vmatprep.subr.bf16.mxu0 0
    %976 = vmatpush2.bf16.msra.mxu0 0
    %977 = vmatprep.subr.bf16.mxu0 0
    %978 = vmatpush2.bf16.msra.mxu0 0
    %979 = vmatprep.subr.bf16.mxu0 0
    %980 = vmatpush2.bf16.msra.mxu0 0
    %981 = vmatprep.subr.bf16.mxu0 0
    %982 = vmatpush2.bf16.msra.mxu0 0
    %983 = vmatprep.subr.bf16.mxu0 0
    %984 = vmatpush2.bf16.msra.mxu0 0
    %985 = vmatprep.subr.bf16.mxu0 0
    %986 = vmatpush2.bf16.msra.mxu0 0
    %987 = vmatprep.subr.bf16.mxu0 0
    %988 = vmatpush2.bf16.msra.mxu0 0
    %989 = vmatprep.mubr.bf16.mxu0 0
    %990 = vmatmul.mubr.bf16.gmra.mxu0 %v907
    %v991 = vpop.f32.mrf.mxu0
    %v992 = vadd.f32 %v875, %v991
    %v993 = vpop.f32.mrf.mxu0
    %v994 = vpop.f32.mrf.mxu0
    %v995 = vpop.f32.mrf.mxu0
    %996 = vdwg.mxu0
    %v997 = vmax.f32 %v992, 0.0
    %v998 = vpack.c.bf16 %v997, %v997
    %v999 = vld [vmem:[#allocation5] sm:$0xf]
    %v1000 = vld [vmem:[#allocation5 + $0x4] sm:$0xf]
    %v1001 = vld [vmem:[#allocation5 + $0x8] sm:$0xf]
    %v1002 = vld [vmem:[#allocation5 + $0xc] sm:$0xf]
    %v1003 = vld [vmem:[#allocation5 + $0x10] sm:$0xf]
    %v1004 = vld [vmem:[#allocation5 + $0x14] sm:$0xf]
    %v1005 = vld [vmem:[#allocation5 + $0x18] sm:$0xf]
    %v1006 = vld [vmem:[#allocation5 + $0x1c] sm:$0xf]
    %v1007 = vld [vmem:[#allocation5 + $0x20] sm:$0xf]
    %v1008 = vld [vmem:[#allocation5 + $0x24] sm:$0xf]
    %v1009 = vld [vmem:[#allocation5 + $0x28] sm:$0xf]
    %v1010 = vld [vmem:[#allocation5 + $0x2c] sm:$0xf]
    %v1011 = vld [vmem:[#allocation5 + $0x30] sm:$0xf]
    %v1012 = vld [vmem:[#allocation5 + $0x34] sm:$0xf]
    %v1013 = vld [vmem:[#allocation5 + $0x38] sm:$0xf]
    %v1014 = vld [vmem:[#allocation5 + $0x3c] sm:$0xf]
    %v1015 = vld [vmem:[%s5] sm:$0x1]
    %v1017 = vlaneseq
    %v1018 = vshrl.u32 %v1017, 7
    %v1019 = vsub.s32 0, %v1018
    %v1020 = vrot.slane %v1015, %v1019
    %v1038 = vunpack.c.l.b16 %v999
    %v1039 = vunpack.c.l.b16 %v1000
    %v1040 = vunpack.c.l.b16 %v1001
    %v1041 = vunpack.c.l.b16 %v1002
    %v1042 = vunpack.c.l.b16 %v1003
    %v1043 = vunpack.c.l.b16 %v1004
    %v1044 = vunpack.c.l.b16 %v1005
    %v1045 = vunpack.c.l.b16 %v1006
    %v1046 = vunpack.c.l.b16 %v1007
    %v1047 = vunpack.c.l.b16 %v1008
    %v1048 = vunpack.c.l.b16 %v1009
    %v1049 = vunpack.c.l.b16 %v1010
    %v1050 = vunpack.c.l.b16 %v1011
    %v1051 = vunpack.c.l.b16 %v1012
    %v1052 = vunpack.c.l.b16 %v1013
    %v1053 = vunpack.c.l.b16 %v1014
    %v1054 = vpack.c.b16 %v1039, %v1038
    %v1055 = vpack.c.b16 %v1041, %v1040
    %v1056 = vpack.c.b16 %v1043, %v1042
    %v1057 = vpack.c.b16 %v1045, %v1044
    %v1058 = vpack.c.b16 %v1047, %v1046
    %v1059 = vpack.c.b16 %v1049, %v1048
    %v1060 = vpack.c.b16 %v1051, %v1050
    %v1061 = vpack.c.b16 %v1053, %v1052
    %1070 = vmatprep.subr.bf16.mxu0 0
    %1071 = vmatpush1.bf16.msra.mxu0 %v1061
    %1072 = vmatprep.subr.bf16.mxu0 0
    %1073 = vmatpush1.bf16.msra.mxu0 %v1060
    %1074 = vmatprep.subr.bf16.mxu0 0
    %1075 = vmatpush1.bf16.msra.mxu0 %v1059
    %1076 = vmatprep.subr.bf16.mxu0 0
    %1077 = vmatpush1.bf16.msra.mxu0 %v1058
    %1078 = vmatprep.subr.bf16.mxu0 0
    %1079 = vmatpush1.bf16.msra.mxu0 %v1057
    %1080 = vmatprep.subr.bf16.mxu0 0
    %1081 = vmatpush1.bf16.msra.mxu0 %v1056
    %1082 = vmatprep.subr.bf16.mxu0 0
    %1083 = vmatpush1.bf16.msra.mxu0 %v1055
    %1084 = vmatprep.subr.bf16.mxu0 0
    %1085 = vmatpush1.bf16.msra.mxu0 %v1054
    %1086 = vmatprep.subr.bf16.mxu0 0
    %1087 = vmatpush2.bf16.msra.mxu0 0
    %1088 = vmatprep.subr.bf16.mxu0 0
    %1089 = vmatpush2.bf16.msra.mxu0 0
    %1090 = vmatprep.subr.bf16.mxu0 0
    %1091 = vmatpush2.bf16.msra.mxu0 0
    %1092 = vmatprep.subr.bf16.mxu0 0
    %1093 = vmatpush2.bf16.msra.mxu0 0
    %1094 = vmatprep.subr.bf16.mxu0 0
    %1095 = vmatpush2.bf16.msra.mxu0 0
    %1096 = vmatprep.subr.bf16.mxu0 0
    %1097 = vmatpush2.bf16.msra.mxu0 0
    %1098 = vmatprep.subr.bf16.mxu0 0
    %1099 = vmatpush2.bf16.msra.mxu0 0
    %1100 = vmatprep.subr.bf16.mxu0 0
    %1101 = vmatpush2.bf16.msra.mxu0 0
    %1102 = vmatprep.mubr.bf16.mxu0 0
    %1103 = vmatmul.mubr.bf16.gmra.mxu0 %v998
    %v1104 = vpop.f32.mrf.mxu0
    %v1105 = vadd.f32 %v1020, %v1104
    %v1106 = vpop.f32.mrf.mxu0
    %v1107 = vpop.f32.mrf.mxu0
    %v1108 = vpop.f32.mrf.mxu0
    %1109 = vdwg.mxu0
    %1110 = vst [vmem:[#allocation7] sm:$0xff] %v1105
    // Predicated region
    $region34: #{textcnn_forward.1} parent=1 // pred_check
      _
    $region35: #{textcnn_forward.1} parent=1 // pred_check_branch
      %1112 = sbr.rel (0) target = $region37
    $region36: #{textcnn_forward.1} parent=1 // pred_region
      %s1114 = ssub.s32 128, 128
      %1115 = vsyncadd [#allocation4], %s1114
      %s1117 = sshll.u32 [#allocation7], 4
      %s1118 = int_to_ptr.vmem [resolvable:$true] %s1117
      %1120 = dma.vmem_to_hbm [thread:$0]  %s1118, 128, %s6, [#allocation4]
    $region37: #{textcnn_forward.1} parent=1 // pred_fallthru
      _
    // Predicated region
    $region38: #{textcnn_forward.1} parent=1 // pred_check
      _
    $region39: #{textcnn_forward.1} parent=1 // pred_check_branch
      %1122 = sbr.rel (0) target = $region41
    $region40: #{textcnn_forward.1} parent=1 // pred_region
      %1123 = dma.done [#allocation4], 128
    $region41: #{textcnn_forward.1} parent=1 // pred_fallthru
      _
    %1124 = vsyncpa [#allocation3], 1
    %1125 = vsyncpa [#allocation6], 1
    %1126 = vsyncpa [#allocation4], 1

</llo_original>
